<compile_context>
chip_gen: v6e
topology: v6e:2x2x1
jax: 0.10.0
libtpu: 0.0.40
codegen_flags: <defaults>
</compile_context>

<pallas_src>
import math

import jax
import jax.numpy as jnp
from jax.experimental import pallas as pl
from jax.experimental.pallas import tpu as pltpu


def _vmem_limit_bytes():
    """Generation-aware scoped-VMEM limit (48 MiB fallback for v7x-style 64 MiB parts)."""
    try:
        cap = int(pltpu.get_tpu_info().vmem_capacity_bytes)
        return max(32 * 1024 * 1024, min(cap - 16 * 1024 * 1024, 100 * 1024 * 1024))
    except Exception:
        return 48 * 1024 * 1024


_VMEM_LIMIT = _vmem_limit_bytes()


def _choose_tile(n, target, multiple):
    """Largest divisor of n that is <= target and a multiple of `multiple`; else n (whole)."""
    if n <= target:
        return n
    start = target - (target % multiple)
    for t in range(start, multiple - 1, -multiple):
        if n % t == 0:
            return t
    # TODO(synk): bags whose length has no suitable divisor fall back to whole-bag tiles
    #             (correct, just unpipelined); a masked-edge-tile path would remove this.
    return n


_compiler_params_2d = pltpu.CompilerParams(
    dimension_semantics=("parallel", "parallel"), vmem_limit_bytes=_VMEM_LIMIT)


# ----------------------------------------------------------------------------
# Generic linear kernel (bf16 matmul + f32 bias, optional GELU, optional fused residual)
# ----------------------------------------------------------------------------
def _make_linear_kernel(activation, has_add):
    def kernel(*refs):
        if has_add:
            x_ref, w_ref, b_ref, add_ref, o_ref = refs
        else:
            x_ref, w_ref, b_ref, o_ref = refs
        x = x_ref[0].astype(jnp.bfloat16)                               # (TN, Din)
        y = jnp.dot(x, w_ref[...], preferred_element_type=jnp.float32)
        y = y + b_ref[...]                                              # (1, Dout) f32
        if activation == "gelu":
            # TODO(synk): torch.nn.GELU defaults to exact erf; tanh approximation used here.
            y = jax.nn.gelu(y)
        if has_add:
            y = y + add_ref[0].astype(jnp.float32)
        o_ref[0] = y.astype(o_ref.dtype)
    return kernel


def pallas_linear(x, w, b, add=None, activation=None, tile_n=1024, out_dtype=jnp.bfloat16):
    B, N, Din = x.shape
    Dout = w.shape[1]
    TN = _choose_tile(N, tile_n, 8)
    args = [x, w.astype(jnp.bfloat16), b.reshape(1, Dout).astype(jnp.float32)]
    in_specs = [
        pl.BlockSpec((1, TN, Din), lambda i, n: (i, n, 0)),
        pl.BlockSpec((Din, Dout), lambda i, n: (0, 0)),
        pl.BlockSpec((1, Dout), lambda i, n: (0, 0)),
    ]
    if add is not None:
        args.append(add)
        in_specs.append(pl.BlockSpec((1, TN, Dout), lambda i, n: (i, n, 0)))
    return pl.pallas_call(
        _make_linear_kernel(activation, add is not None),
        out_shape=jax.ShapeDtypeStruct((B, N, Dout), out_dtype),
        grid=(B, N // TN),
        in_specs=in_specs,
        out_specs=pl.BlockSpec((1, TN, Dout), lambda i, n: (i, n, 0)),
        compiler_params=_compiler_params_2d,
    )(*args)


# ----------------------------------------------------------------------------
# Fused LN1 + QKV projection + RoPE kernel.  Emits pre-rotated, pre-scaled q, rotated k, and v
# as three separate lane-dense (B, N, hidden) bf16 tensors (attention-ready layout).
# ----------------------------------------------------------------------------
def _make_ln_qkv_rope_kernel(n_heads, dh):
    half = dh // 2

    def kernel(x_ref, g_ref, bln_ref, wq_ref, wk_ref, wv_ref, bq_ref, bk_ref, bv_ref,
               cos_ref, sin_ref, q_out, k_out, v_out):
        x = x_ref[0].astype(jnp.float32)                                # (TN, hidden)
        mean = jnp.mean(x, axis=-1, keepdims=True)
        var = jnp.mean(jnp.square(x - mean), axis=-1, keepdims=True)
        xn = ((x - mean) * jax.lax.rsqrt(var + 1e-5) * g_ref[...] + bln_ref[...]
              ).astype(jnp.bfloat16)

        q = jnp.dot(xn, wq_ref[...], preferred_element_type=jnp.float32) + bq_ref[...]
        k = jnp.dot(xn, wk_ref[...], preferred_element_type=jnp.float32) + bk_ref[...]
        v = jnp.dot(xn, wv_ref[...], preferred_element_type=jnp.float32) + bv_ref[...]

        cos = cos_ref[0]                                                # (TN, dh) f32
        sin = sin_ref[0]                                                # signed-sin, (TN, dh)

        def rope(t):
            # rotate-half per head; the -1/+1 sign is pre-folded into `sin` (no negate here).
            parts = []
            for h in range(n_heads):
                th = t[:, h * dh:(h + 1) * dh]
                rot = jnp.concatenate([th[:, half:], th[:, :half]], axis=-1)
                parts.append(th * cos + rot * sin)
            return jnp.concatenate(parts, axis=-1)

        q_out[0] = rope(q).astype(q_out.dtype)                          # scale folded into wq/bq
        k_out[0] = rope(k).astype(k_out.dtype)
        v_out[0] = v.astype(v_out.dtype)
    return kernel


def pallas_ln_qkv_rope(x, ln_g, ln_b, wq, bq, wk, bk, wv, bv, cos, sin_signed,
                       n_heads, tile_n=1024):
    B, N, hidden = x.shape
    dh = hidden // n_heads
    TN = _choose_tile(N, tile_n, 8)
    xspec = pl.BlockSpec((1, TN, hidden), lambda i, n: (i, n, 0))
    wspec = pl.BlockSpec((hidden, hidden), lambda i, n: (0, 0))
    bspec = pl.BlockSpec((1, hidden), lambda i, n: (0, 0))
    cspec = pl.BlockSpec((1, TN, dh), lambda i, n: (i, n, 0))
    out_sds = jax.ShapeDtypeStruct((B, N, hidden), jnp.bfloat16)
    return pl.pallas_call(
        _make_ln_qkv_rope_kernel(n_heads, dh),
        out_shape=(out_sds, out_sds, out_sds),
        grid=(B, N // TN),
        in_specs=[xspec, bspec, bspec, wspec, wspec, wspec, bspec, bspec, bspec, cspec, cspec],
        out_specs=(xspec, xspec, xspec),
        compiler_params=_compiler_params_2d,
    )(x,
      ln_g.reshape(1, hidden).astype(jnp.float32),
      ln_b.reshape(1, hidden).astype(jnp.float32),
      wq.astype(jnp.bfloat16), wk.astype(jnp.bfloat16), wv.astype(jnp.bfloat16),
      bq.reshape(1, hidden).astype(jnp.float32),
      bk.reshape(1, hidden).astype(jnp.float32),
      bv.reshape(1, hidden).astype(jnp.float32),
      cos.astype(jnp.float32), sin_signed.astype(jnp.float32))


# ----------------------------------------------------------------------------
# Fused LN2 + FFN1 + GELU kernel
# ----------------------------------------------------------------------------
def _ln_ffn1_kernel(x_ref, g_ref, bln_ref, w_ref, b_ref, o_ref):
    x = x_ref[0].astype(jnp.float32)
    mean = jnp.mean(x, axis=-1, keepdims=True)
    var = jnp.mean(jnp.square(x - mean), axis=-1, keepdims=True)
    xn = ((x - mean) * jax.lax.rsqrt(var + 1e-5) * g_ref[...] + bln_ref[...]
          ).astype(jnp.bfloat16)
    y = jnp.dot(xn, w_ref[...], preferred_element_type=jnp.float32) + b_ref[...]
    y = jax.nn.gelu(y)
    o_ref[0] = y.astype(o_ref.dtype)


def pallas_ln_ffn1(x, ln_g, ln_b, w, b, tile_n=1024):
    B, N, hidden = x.shape
    Dout = w.shape[1]
    TN = _choose_tile(N, tile_n, 8)
    return pl.pallas_call(
        _ln_ffn1_kernel,
        out_shape=jax.ShapeDtypeStruct((B, N, Dout), jnp.bfloat16),
        grid=(B, N // TN),
        in_specs=[
            pl.BlockSpec((1, TN, hidden), lambda i, n: (i, n, 0)),
            pl.BlockSpec((1, hidden), lambda i, n: (0, 0)),
            pl.BlockSpec((1, hidden), lambda i, n: (0, 0)),
            pl.BlockSpec((hidden, Dout), lambda i, n: (0, 0)),
            pl.BlockSpec((1, Dout), lambda i, n: (0, 0)),
        ],
        out_specs=pl.BlockSpec((1, TN, Dout), lambda i, n: (i, n, 0)),
        compiler_params=_compiler_params_2d,
    )(x, ln_g.reshape(1, hidden).astype(jnp.float32),
      ln_b.reshape(1, hidden).astype(jnp.float32),
      w.astype(jnp.bfloat16), b.reshape(1, Dout).astype(jnp.float32))


# ----------------------------------------------------------------------------
# Fused FFN2 + residual + DSMIL instance classifier kernel
# (encoded features bf16 + lane-dense (B, C, N) instance scores in a single pass)
# ----------------------------------------------------------------------------
def _ffn2_resid_inst_kernel(x_ref, w_ref, b_ref, add_ref, wicT_ref, bic_ref,
                            enc_ref, inst_ref):
    x = x_ref[0].astype(jnp.bfloat16)                                   # (TN, Dff)
    y = jnp.dot(x, w_ref[...], preferred_element_type=jnp.float32) + b_ref[...]
    y = y + add_ref[0].astype(jnp.float32)                              # residual, (TN, hidden)
    enc_ref[0] = y.astype(enc_ref.dtype)
    s = jnp.einsum("ch,nh->cn", wicT_ref[...], y.astype(jnp.bfloat16),
                   preferred_element_type=jnp.float32)                  # (C, TN)
    inst_ref[0] = (s + bic_ref[...]).astype(inst_ref.dtype)


def pallas_ffn2_resid_instcls(x, w, b, resid, ic_w, ic_b, tile_n=1024):
    B, N, Dff = x.shape
    hidden = w.shape[1]
    C = ic_w.shape[1]
    TN = _choose_tile(N, tile_n, 128)
    out_shape = (
        jax.ShapeDtypeStruct((B, N, hidden), jnp.bfloat16),   # encoded features
        jax.ShapeDtypeStruct((B, C, N), jnp.float32),         # instance scores, lane-dense
    )
    out_specs = (
        pl.BlockSpec((1, TN, hidden), lambda i, n: (i, n, 0)),
        pl.BlockSpec((1, C, TN), lambda i, n: (i, 0, n)),
    )
    in_specs = [
        pl.BlockSpec((1, TN, Dff), lambda i, n: (i, n, 0)),
        pl.BlockSpec((Dff, hidden), lambda i, n: (0, 0)),
        pl.BlockSpec((1, hidden), lambda i, n: (0, 0)),
        pl.BlockSpec((1, TN, hidden), lambda i, n: (i, n, 0)),
        pl.BlockSpec((C, hidden), lambda i, n: (0, 0)),
        pl.BlockSpec((C, 1), lambda i, n: (0, 0)),
    ]
    return pl.pallas_call(
        _ffn2_resid_inst_kernel,
        out_shape=out_shape,
        grid=(B, N // TN),
        in_specs=in_specs,
        out_specs=out_specs,
        compiler_params=_compiler_params_2d,
    )(x, w.astype(jnp.bfloat16), b.reshape(1, hidden).astype(jnp.float32), resid,
      ic_w.T.astype(jnp.bfloat16), ic_b.reshape(C, 1).astype(jnp.float32))


# ----------------------------------------------------------------------------
# Flash attention over pre-rotated, pre-scaled q/k in (B, N, hidden) layout.
# Heads handled by static lane slices inside the kernel; output lane-dense (B, N, hidden).
# ----------------------------------------------------------------------------
def _make_flash_kernel(n_heads, dh):
    def kernel(q_ref, k_ref, v_ref, o_ref, m_sc, l_sc, acc_sc):
        ki = pl.program_id(2)

        @pl.when(ki == 0)
        def _():
            m_sc[...] = jnp.full_like(m_sc, -jnp.inf)
            l_sc[...] = jnp.zeros_like(l_sc)
            acc_sc[...] = jnp.zeros_like(acc_sc)

        q = q_ref[0]                                                    # (TQ, hidden) bf16
        k = k_ref[0]                                                    # (TK, hidden) bf16
        v = v_ref[0]                                                    # (TK, hidden) bf16
        dn = (((1,), (1,)), ((), ()))                                   # contract last dims

        for h in range(n_heads):
            sl = slice(h * dh, (h + 1) * dh)
            s = jax.lax.dot_general(q[:, sl], k[:, sl], dn,
                                    preferred_element_type=jnp.float32)  # (TQ, TK)
            m_prev = m_sc[h]
            m_new = jnp.maximum(m_prev, jnp.max(s, axis=-1, keepdims=True))
            alpha = jnp.exp(m_prev - m_new)
            p = jnp.exp(s - m_new)
            l_sc[h] = alpha * l_sc[h] + jnp.sum(p, axis=-1, keepdims=True)
            acc_sc[h] = alpha * acc_sc[h] + jnp.dot(
                p.astype(jnp.bfloat16), v[:, sl], preferred_element_type=jnp.float32)
            m_sc[h] = m_new

        @pl.when(ki == pl.num_programs(2) - 1)
        def _():
            outs = [acc_sc[h] * pl.reciprocal(l_sc[h], approx=True) for h in range(n_heads)]
            o_ref[0] = jnp.concatenate(outs, axis=-1).astype(o_ref.dtype)
    return kernel


def pallas_flash_attention(q, k, v, n_heads, tile_q=512, tile_kv=512):
    B, N, hidden = q.shape
    dh = hidden // n_heads
    TQ = _choose_tile(N, tile_q, 8)
    TK = _choose_tile(N, tile_kv, 128)      # TK is the MXU N dim / lane dim of the scores
    qspec = pl.BlockSpec((1, TQ, hidden), lambda b, qi, ki: (b, qi, 0))
    kspec = pl.BlockSpec((1, TK, hidden), lambda b, qi, ki: (b, ki, 0))
    return pl.pallas_call(
        _make_flash_kernel(n_heads, dh),
        out_shape=jax.ShapeDtypeStruct((B, N, hidden), jnp.bfloat16),
        grid=(B, N // TQ, N // TK),
        in_specs=[qspec, kspec, kspec],
        out_specs=qspec,
        scratch_shapes=[
            pltpu.VMEM((n_heads, TQ, 1), jnp.float32),
            pltpu.VMEM((n_heads, TQ, 1), jnp.float32),
            pltpu.VMEM((n_heads, TQ, dh), jnp.float32),
        ],
        compiler_params=pltpu.CompilerParams(
            dimension_semantics=("parallel", "parallel", "arbitrary"),
            vmem_limit_bytes=_VMEM_LIMIT),
    )(q, k, v)


# ----------------------------------------------------------------------------
# DSMIL bag head: streaming over N with online softmax; emits raw attention logits (B, C, N)
# lane-dense, bag reps (B, C, H), conv1d logits (B, C, 1).
# ----------------------------------------------------------------------------
def _dsmil_bag_kernel(feats_ref, wq_ref, bq_ref, qmax_ref, wfcc_ref, bfcc_ref,
                      score_ref, bag_ref, logit_ref, m_sc, l_sc, acc_sc):
    ni = pl.program_id(1)

    @pl.when(ni == 0)
    def _():
        m_sc[...] = jnp.full_like(m_sc, -jnp.inf)
        l_sc[...] = jnp.zeros_like(l_sc)
        acc_sc[...] = jnp.zeros_like(acc_sc)

    fb = feats_ref[0].astype(jnp.bfloat16)                              # (TN, H)
    q_t = jnp.dot(fb, wq_ref[...], preferred_element_type=jnp.float32) + bq_ref[...]  # (TN, Dq)
    qm = qmax_ref[0].astype(jnp.bfloat16)                               # (C, Dq), pre-scaled
    s = jnp.einsum("cd,nd->cn", qm, q_t.astype(jnp.bfloat16),
                   preferred_element_type=jnp.float32)                  # (C, TN)
    score_ref[0] = s.astype(score_ref.dtype)

    m_prev = m_sc[...]
    m_new = jnp.maximum(m_prev, jnp.max(s, axis=-1, keepdims=True))     # (C, 1)
    alpha = jnp.exp(m_prev - m_new)
    p = jnp.exp(s - m_new)                                              # (C, TN)
    l_sc[...] = alpha * l_sc[...] + jnp.sum(p, axis=-1, keepdims=True)
    acc_sc[...] = alpha * acc_sc[...] + jnp.dot(
        p.astype(jnp.bfloat16), fb, preferred_element_type=jnp.float32)  # (C, H)
    m_sc[...] = m_new

    @pl.when(ni == pl.num_programs(1) - 1)
    def _():
        bag = acc_sc[...] * pl.reciprocal(l_sc[...])                    # exact on the logit path
        bag_ref[0] = bag.astype(bag_ref.dtype)
        # fcc = Conv1d(C, C, kernel_size=H) over the bag rep == full contraction over (C_in, H)
        contrib = jnp.sum(wfcc_ref[...] * bag[None, :, :], axis=-1)     # (C_out, C_in)
        logits = jnp.sum(contrib, axis=-1, keepdims=True) + bfcc_ref[...]   # (C_out, 1)
        logit_ref[0] = logits.astype(logit_ref.dtype)


def pallas_dsmil_bag(feats, wq, bq, q_max_scaled, wfcc, bfcc, tile_n=1024):
    B, N, H = feats.shape
    C = q_max_scaled.shape[1]
    Dq = wq.shape[1]
    TN = _choose_tile(N, tile_n, 128)
    out_shape = (
        jax.ShapeDtypeStruct((B, C, N), jnp.float32),   # raw (scaled) attention logits
        jax.ShapeDtypeStruct((B, C, H), jnp.float32),   # bag representations
        jax.ShapeDtypeStruct((B, C, 1), jnp.float32),   # conv1d logits
    )
    in_specs = [
        pl.BlockSpec((1, TN, H), lambda i, n: (i, n, 0)),
        pl.BlockSpec((H, Dq), lambda i, n: (0, 0)),
        pl.BlockSpec((1, Dq), lambda i, n: (0, 0)),
        pl.BlockSpec((1, C, Dq), lambda i, n: (i, 0, 0)),
        pl.BlockSpec((C, C, H), lambda i, n: (0, 0, 0)),
        pl.BlockSpec((C, 1), lambda i, n: (0, 0)),
    ]
    out_specs = (
        pl.BlockSpec((1, C, TN), lambda i, n: (i, 0, n)),
        pl.BlockSpec((1, C, H), lambda i, n: (i, 0, 0)),
        pl.BlockSpec((1, C, 1), lambda i, n: (i, 0, 0)),
    )
    # TODO(synk): on v7x megacore the parallel extent here is only B; splitting the N axis into a
    #             leading parallel axis with a cross-core combine would keep both cores busy.
    return pl.pallas_call(
        _dsmil_bag_kernel,
        out_shape=out_shape,
        grid=(B, N // TN),
        in_specs=in_specs,
        out_specs=out_specs,
        scratch_shapes=[
            pltpu.VMEM((C, 1), jnp.float32),
            pltpu.VMEM((C, 1), jnp.float32),
            pltpu.VMEM((C, H), jnp.float32),
        ],
        compiler_params=pltpu.CompilerParams(
            dimension_semantics=("parallel", "arbitrary"),
            vmem_limit_bytes=_VMEM_LIMIT),
    )(feats, wq.astype(jnp.bfloat16), bq.reshape(1, Dq).astype(jnp.float32),
      q_max_scaled.astype(jnp.float32), wfcc.astype(jnp.float32),
      bfcc.reshape(C, 1).astype(jnp.float32))


# ----------------------------------------------------------------------------
# Positional tables (parameter-free setup from coords)
# ----------------------------------------------------------------------------
def sine_positional_embedding(coords, dim):
    """SinePositionalEmbedding(hidden_dim) over 2D coords -> (B, N, dim)."""
    assert dim % 4 == 0, "hidden_dim must be divisible by 4 for sin/cos PE"
    nfreq = dim // 4
    inv_freq = 1.0 / (10000.0 ** (jnp.arange(nfreq, dtype=jnp.float32) / nfreq))
    fx = coords[..., 0:1] * inv_freq
    fy = coords[..., 1:2] * inv_freq
    return jnp.concatenate([jnp.sin(fx), jnp.cos(fx), jnp.sin(fy), jnp.cos(fy)], axis=-1)


def rope_tables(coords, head_dim):
    """Axial 2D rotary cos / signed-sin tables, (B, N, head_dim) each.

    sin_signed has the rotate-half sign (-1 on the first half) folded in, so the kernel never
    negates.
    """
    assert head_dim % 4 == 0, "head_dim must be divisible by 4 for axial 2D RoPE"
    nfreq = head_dim // 4
    inv_freq = 1.0 / (10000.0 ** (jnp.arange(nfreq, dtype=jnp.float32) / nfreq))
    fx = coords[..., 0:1] * inv_freq
    fy = coords[..., 1:2] * inv_freq
    half = jnp.concatenate([fx, fy], axis=-1)                           # (B, N, head_dim/2)
    ang = jnp.concatenate([half, half], axis=-1)                        # (B, N, head_dim)
    sin_half = jnp.sin(half)
    sin_signed = jnp.concatenate([-sin_half, sin_half], axis=-1)
    return jnp.cos(ang), sin_signed


# ----------------------------------------------------------------------------
# Parameters + full forward
# ----------------------------------------------------------------------------
def init_params(key, input_dim, hidden, ffn_dim, n_classes, q_dim):
    ks = jax.random.split(key, 12)

    def lin(k, din, dout):
        return (0.02 * jax.random.normal(k, (din, dout), jnp.float32),
                jnp.zeros((dout,), jnp.float32))

    p = {}
    p["proj_w"], p["proj_b"] = lin(ks[0], input_dim, hidden)            # dim_reduction_projection
    p["ln1_g"], p["ln1_b"] = jnp.ones((hidden,), jnp.float32), jnp.zeros((hidden,), jnp.float32)
    p["wq"], p["bq"] = lin(ks[1], hidden, hidden)
    p["wk"], p["bk"] = lin(ks[2], hidden, hidden)
    p["wv"], p["bv"] = lin(ks[3], hidden, hidden)
    p["wo"], p["bo"] = lin(ks[4], hidden, hidden)
    p["ln2_g"], p["ln2_b"] = jnp.ones((hidden,), jnp.float32), jnp.zeros((hidden,), jnp.float32)
    p["ffn1_w"], p["ffn1_b"] = lin(ks[5], hidden, ffn_dim)
    p["ffn2_w"], p["ffn2_b"] = lin(ks[6], ffn_dim, hidden)
    p["ic_w"], p["ic_b"] = lin(ks[7], hidden, n_classes)                # DSMIL instance classifier
    p["bq_w"], p["bq_b"] = lin(ks[8], hidden, q_dim)                    # DSMIL q projection
    p["fcc_w"] = 0.02 * jax.random.normal(ks[9], (n_classes, n_classes, hidden), jnp.float32)
    p["fcc_b"] = jnp.zeros((n_classes,), jnp.float32)
    return p


def rope_dsmil_forward(params, features, coords, n_heads):
    B, N, _ = features.shape
    hidden = params["proj_w"].shape[1]
    assert hidden % n_heads == 0
    dh = hidden // n_heads

    # dim reduction projection + absolute sin/cos positional embedding (fused add in kernel)
    pe = sine_positional_embedding(coords, hidden)
    h = pallas_linear(features, params["proj_w"], params["proj_b"], add=pe)     # bf16

    # --- RoFormer encoder layer (RoPE over 2D coords), pre-LN ---
    # LN1 + QKV + RoPE fused; 1/sqrt(dh) folded into wq/bq (rotation is linear, scale commutes)
    cos, sin_signed = rope_tables(coords, dh)
    scale = 1.0 / math.sqrt(dh)
    q, k, v = pallas_ln_qkv_rope(
        h, params["ln1_g"], params["ln1_b"],
        params["wq"] * scale, params["bq"] * scale,
        params["wk"], params["bk"], params["wv"], params["bv"],
        cos, sin_signed, n_heads)                                        # (B, N, hidden) bf16 each

    attn_out = pallas_flash_attention(q, k, v, n_heads)                  # (B, N, hidden) bf16
    h = pallas_linear(attn_out, params["wo"], params["bo"], add=h)       # residual fused in kernel

    f1 = pallas_ln_ffn1(h, params["ln2_g"], params["ln2_b"],
                        params["ffn1_w"], params["ffn1_b"])              # LN2 + FFN1 + GELU fused
    # FFN2 + residual + DSMIL instance classifier fused (saves one full stream of encoded)
    encoded, inst_cn = pallas_ffn2_resid_instcls(
        f1, params["ffn2_w"], params["ffn2_b"], h, params["ic_w"], params["ic_b"])

    # --- DSMIL head ---
    # tiny XLA glue: critical instance per class (first argmax), gather, q_max projection
    crit_idx = jnp.argmax(inst_cn, axis=-1)                              # (B, C) first-max
    m_feats = jax.vmap(lambda e, idx: e[idx, :])(encoded, crit_idx).astype(jnp.float32)  # (B,C,H)
    q_dim = params["bq_w"].shape[1]
    q_max = jnp.einsum("bch,hd->bcd", m_feats, params["bq_w"]) + params["bq_b"]
    q_max = q_max * (1.0 / math.sqrt(q_dim))                             # fold 1/sqrt(Dq) scale

    # streaming attention/bag/logits over N
    scores, bag_reps, logits_raw = pallas_dsmil_bag(
        encoded, params["bq_w"], params["bq_b"], q_max, params["fcc_w"], params["fcc_b"])
    attn_scores = jax.nn.softmax(scores, axis=-1)                        # softmax over instances

    return {
        "logits": logits_raw[:, :, 0],                              # (B, n_classes)
        "attention_scores": attn_scores,                            # (B, n_classes, n_patches)
        "updated_features": encoded.astype(jnp.float32),            # (B, n_patches, hidden)
        "patches_predictions": jnp.swapaxes(inst_cn, 1, 2),         # (B, n_patches, n_classes)
    }


if __name__ == "__main__":
    B, N, INPUT_DIM, HIDDEN = 2, 16, 48, 32
    N_HEADS, FFN_DIM, N_CLASSES, Q_DIM = 2, 64, 3, 32

    key = jax.random.PRNGKey(0)
    kp, kf, kc = jax.random.split(key, 3)

    params = init_params(kp, INPUT_DIM, HIDDEN, FFN_DIM, N_CLASSES, Q_DIM)
    features = jax.random.normal(kf, (B, N, INPUT_DIM), jnp.float32)
    coords = jax.random.uniform(kc, (B, N, 2), jnp.float32, minval=0.0, maxval=64.0)

    out = rope_dsmil_forward(params, features, coords, N_HEADS)
    jax.block_until_ready(out)

    assert out["logits"].shape == (B, N_CLASSES)
    assert out["attention_scores"].shape == (B, N_CLASSES, N)
    assert out["updated_features"].shape == (B, N, HIDDEN)
    assert out["patches_predictions"].shape == (B, N, N_CLASSES)
    assert all(bool(jnp.all(jnp.isfinite(v))) for v in out.values())
    print("KERNEL_OK")
</pallas_src>

<mosaic_0001>
module attributes {stable_mosaic.version = 11 : i64} {
  func.func @kernel(%arg0: i32, %arg1: i32, %arg2: memref<1x16x48xf32, #tpu.memory_space<vmem>>, %arg3: memref<48x32xbf16, #tpu.memory_space<vmem>>, %arg4: memref<1x32xf32, #tpu.memory_space<vmem>>, %arg5: memref<1x16x32xf32, #tpu.memory_space<vmem>>, %arg6: memref<1x16x32xbf16, #tpu.memory_space<vmem>>) attributes {dimension_semantics = [#tpu.dimension_semantics<parallel>, #tpu.dimension_semantics<parallel>], iteration_bounds = array<i64: 2, 1>, scalar_prefetch = 0 : i64, scratch_operands = 0 : i64, tpu.core_type = #tpu.core_type<tc>, window_params = [{transform_indices = @transform_0, window_bounds = array<i64: 1, 16, 48>}, {pipeline_mode = #tpu.pipeline_mode<synchronous>, transform_indices = @transform_1, window_bounds = array<i64: 48, 32>}, {pipeline_mode = #tpu.pipeline_mode<synchronous>, transform_indices = @transform_2, window_bounds = array<i64: 1, 32>}, {transform_indices = @transform_3, window_bounds = array<i64: 1, 16, 32>}, {transform_indices = @transform_4, window_bounds = array<i64: 1, 16, 32>}]} {
    %c0 = arith.constant 0 : index
    %c0_0 = arith.constant 0 : index
    %c0_1 = arith.constant 0 : index
    %0 = vector.load %arg2[%c0, %c0_0, %c0_1] : memref<1x16x48xf32, #tpu.memory_space<vmem>>, vector<1x16x48xf32>
    %1 = vector.shape_cast %0 : vector<1x16x48xf32> to vector<16x48xf32>
    %2 = arith.truncf %1 : vector<16x48xf32> to vector<16x48xbf16>
    %c0_2 = arith.constant 0 : index
    %c0_3 = arith.constant 0 : index
    %3 = vector.load %arg3[%c0_2, %c0_3] : memref<48x32xbf16, #tpu.memory_space<vmem>>, vector<48x32xbf16>
    %cst = arith.constant dense<0.000000e+00> : vector<16x32xf32>
    %4 = tpu.matmul %2, %3, %cst {dimension_numbers = #tpu.dot_dimension_numbers<[1], [0], [0], [1], [0, 0, 1, 1], [], []>} : vector<16x48xbf16>, vector<48x32xbf16>, vector<16x32xf32> -> vector<16x32xf32>
    %c0_4 = arith.constant 0 : index
    %c0_5 = arith.constant 0 : index
    %5 = vector.load %arg4[%c0_4, %c0_5] : memref<1x32xf32, #tpu.memory_space<vmem>>, vector<1x32xf32>
    %6 = vector.broadcast %5 : vector<1x32xf32> to vector<16x32xf32>
    %7 = arith.addf %4, %6 : vector<16x32xf32>
    %c0_6 = arith.constant 0 : index
    %c0_7 = arith.constant 0 : index
    %c0_8 = arith.constant 0 : index
    %8 = vector.load %arg5[%c0_6, %c0_7, %c0_8] : memref<1x16x32xf32, #tpu.memory_space<vmem>>, vector<1x16x32xf32>
    %9 = vector.shape_cast %8 : vector<1x16x32xf32> to vector<16x32xf32>
    %10 = arith.addf %7, %9 : vector<16x32xf32>
    %11 = arith.truncf %10 : vector<16x32xf32> to vector<16x32xbf16>
    %c0_9 = arith.constant 0 : index
    %c0_10 = arith.constant 0 : index
    %c0_11 = arith.constant 0 : index
    %12 = vector.load %arg6[%c0_9, %c0_10, %c0_11] : memref<1x16x32xbf16, #tpu.memory_space<vmem>>, vector<1x16x32xbf16>
    %13 = vector.shape_cast %12 : vector<1x16x32xbf16> to vector<16x32xbf16>
    %14 = vector.shape_cast %11 : vector<16x32xbf16> to vector<1x16x32xbf16>
    tpu.vector_store %arg6[%c0_9, %c0_10, %c0_11], %14 {strides = array<i32>} : memref<1x16x32xbf16, #tpu.memory_space<vmem>>, vector<1x16x32xbf16>,
    return
  }
  func.func @transform_0(%arg0: i32, %arg1: i32) -> (i32, i32, i32) {
    %c0_i32 = arith.constant 0 : i32
    %c0_i32_0 = arith.constant 0 : i32
    return %arg0, %arg1, %c0_i32 : i32, i32, i32
  }
  func.func @transform_1(%arg0: i32, %arg1: i32) -> (i32, i32) {
    %c0_i32 = arith.constant 0 : i32
    %c0_i32_0 = arith.constant 0 : i32
    %c0_i32_1 = arith.constant 0 : i32
    return %c0_i32, %c0_i32_0 : i32, i32
  }
  func.func @transform_2(%arg0: i32, %arg1: i32) -> (i32, i32) {
    %c0_i32 = arith.constant 0 : i32
    %c0_i32_0 = arith.constant 0 : i32
    %c0_i32_1 = arith.constant 0 : i32
    return %c0_i32, %c0_i32_0 : i32, i32
  }
  func.func @transform_3(%arg0: i32, %arg1: i32) -> (i32, i32, i32) {
    %c0_i32 = arith.constant 0 : i32
    %c0_i32_0 = arith.constant 0 : i32
    return %arg0, %arg1, %c0_i32 : i32, i32, i32
  }
  func.func @transform_4(%arg0: i32, %arg1: i32) -> (i32, i32, i32) {
    %c0_i32 = arith.constant 0 : i32
    %c0_i32_0 = arith.constant 0 : i32
    return %arg0, %arg1, %c0_i32 : i32, i32, i32
  }
}

</mosaic_0001>

<llo_original>
// kernel: tpu_custom_call.1
$region0: #{tpu_custom_call.1}
  #allocation0 [shape = 'u32[]', space=smem, size = 0x4, offset = 0x4, fixed_abs, tag = 'smem constant byte address 0x4 - core index']
  #allocation1 [shape = 'u32[144,128]{1,0:T(1,128)}', space=vmem, size = 0x12000, scoped, tag = 'internal scratch']
  %s0 = inlined_call_operand.vmem [shape: f32[2,16,48], index: 0, kind: input, shape index: {}]
  %s1 = inlined_call_operand.vmem [shape: bf16[48,32], index: 1, kind: input, shape index: {}]
  %s2 = inlined_call_operand.vmem [shape: f32[1,32], index: 2, kind: input, shape index: {}]
  %s3 = inlined_call_operand.hbm [shape: f32[2,16,32], index: 3, kind: input, shape index: {}]
  %s4 = inlined_call_operand.hbm [shape: bf16[2,16,32], index: 4, kind: output, shape index: {}]
  %s5 = sld [smem:[#allocation0]]
  $region53: #{tpu_custom_call.1} parent=0
    _
  %s7 = ssub.s32 1, %s5
  %s8 = scalar_select 0, %s7, %s5
  $region1: #{tpu_custom_call.1} parent=0
    #allocation2 [shape = 'u8[16384]{0}', space=vmem, size = 0x4000, scoped, tag = 'input window, operand 3']
    #allocation3 [shape = 's32[2]{0}', space=sflag, size = 0x8, scoped, tag = 'scoped memory for tpu_custom_call.1']
    #allocation4 [shape = 's32[2]{0}', space=sflag, size = 0x8, scoped, tag = 'scoped memory for tpu_custom_call.1']
    #allocation5 [shape = 'u8[8192]{0}', space=vmem, size = 0x2000, scoped, tag = 'output window, operand 0']
    %9 = vsyncpa [#allocation3], 0
    %s10 = scalar_lea.sflag [#allocation3], 1
    %11 = vsyncpa %s10, 0
    %12 = vsyncpa [#allocation4], 0
    %s13 = scalar_lea.sflag [#allocation4], 1
    %14 = vsyncpa %s13, 0
    loop: start=0, step=1, limit=4
    $region2: #{tpu_custom_call.1} parent=1 // loop_pre_header
      _
    $region3: #{tpu_custom_call.1} parent=1 // loop_header
      %s16 = sphi 0, %s20
      %p17 = scmp.ge.s32.totalorder %s16, 4
      %s23 = sphi 0, %s35
      %s24 = sphi 0, %s31
      %s25 = sphi 0, %s23
      %s26 = sphi 0, %s24
      %s27 = sphi 0, %s25
      %s28 = sphi 0, %s26
      %s40 = sphi 0, %s42
      %s43 = sphi 0, %s40
      %s44 = sphi 0, %s43
      %s60 = sphi 0, %s44
      %s64 = sphi 0, %s64
      %s66 = sphi 0, %s64
      %s67 = sphi 0, %s66
      %s81 = sphi 0, %s67
      %s85 = sphi 0, %s85
      %s87 = sphi 0, %s85
      %s88 = sphi 0, %s87
      %s102 = sphi 0, %s88
      %s110 = sphi 0, %s112
      %s113 = sphi 0, %s110
      %s114 = sphi 0, %s113
      %s130 = sphi 0, %s114
      %s138 = sphi 0, %s140
      %s141 = sphi 0, %s138
      %s142 = sphi 0, %s141
      %s158 = sphi 0, %s142
    $region4: #{tpu_custom_call.1} parent=1 // loop_header_branch
      %19 = sbr.rel (%p17) target = $region8
    $region5: #{tpu_custom_call.1} parent=1 // loop_body
      %s21 = ssub.s32 %s16, 1
      %s22 = ssub.s32 %s16, 2
      %s29 = sadd.s32 1, %s24
      %p30 = scmp.ge.s32.totalorder %s29, 1
      %s31 = scalar_select %p30, 0, %s29
      %s32 = sadd.s32 1, %s23
      %s33 = scalar_select %p30, %s32, %s23
      %p34 = scmp.ge.s32.totalorder %s33, 2
      %s35 = scalar_select %p34, 0, %s33
      %s36 = ssub.s32 %s23, %s35
      %s37 = ssub.s32 %s24, %s31
      %s38 = sor.u32 %s36, %s37
      %p39 = scmp.eq.s32.totalorder %s38, 0
      %s41 = sadd.s32 %s40, 1
      %s42 = scalar_select %p39, %s40, %s41
      %p45 = pneg %p39
      %p46 = scmp.eq.s32.totalorder %s16, 1
      %p47 = por %p45, %p46
      %p48 = scmp.ne.s32.totalorder %s40, %s43
      %p49 = scmp.eq.s32.totalorder %s16, 0
      %p50 = por %p48, %p49
      %p51 = scmp.ne.s32.totalorder %s40, %s43
      %p52 = scmp.eq.s32.totalorder %s21, 1
      %p53 = por %p51, %p52
      %p54 = scmp.ne.s32.totalorder %s43, %s44
      %p55 = scmp.eq.s32.totalorder %s21, 0
      %p56 = por %p54, %p55
      %p57 = scmp.ne.s32.totalorder %s43, %s44
      %p58 = scmp.eq.s32.totalorder %s22, 1
      %p59 = por %p57, %p58
      %p61 = scmp.ne.s32.totalorder %s44, %s60
      %p62 = scmp.eq.s32.totalorder %s22, 0
      %p63 = por %p61, %p62
      %s65 = sadd.s32 %s64, 1
      %p68 = scmp.eq.s32.totalorder %s16, 1
      %p69 = scmp.ne.s32.totalorder %s64, %s66
      %p70 = scmp.eq.s32.totalorder %s16, 0
      %p71 = por %p69, %p70
      %p72 = scmp.ne.s32.totalorder %s64, %s66
      %p73 = scmp.eq.s32.totalorder %s21, 1
      %p74 = por %p72, %p73
      %p75 = scmp.ne.s32.totalorder %s66, %s67
      %p76 = scmp.eq.s32.totalorder %s21, 0
      %p77 = por %p75, %p76
      %p78 = scmp.ne.s32.totalorder %s66, %s67
      %p79 = scmp.eq.s32.totalorder %s22, 1
      %p80 = por %p78, %p79
      %p82 = scmp.ne.s32.totalorder %s67, %s81
      %p83 = scmp.eq.s32.totalorder %s22, 0
      %p84 = por %p82, %p83
      %s86 = sadd.s32 %s85, 1
      %p89 = scmp.eq.s32.totalorder %s16, 1
      %p90 = scmp.ne.s32.totalorder %s85, %s87
      %p91 = scmp.eq.s32.totalorder %s16, 0
      %p92 = por %p90, %p91
      %p93 = scmp.ne.s32.totalorder %s85, %s87
      %p94 = scmp.eq.s32.totalorder %s21, 1
      %p95 = por %p93, %p94
      %p96 = scmp.ne.s32.totalorder %s87, %s88
      %p97 = scmp.eq.s32.totalorder %s21, 0
      %p98 = por %p96, %p97
      %p99 = scmp.ne.s32.totalorder %s87, %s88
      %p100 = scmp.eq.s32.totalorder %s22, 1
      %p101 = por %p99, %p100
      %p103 = scmp.ne.s32.totalorder %s88, %s102
      %p104 = scmp.eq.s32.totalorder %s22, 0
      %p105 = por %p103, %p104
      %s106 = ssub.s32 %s23, %s35
      %s107 = ssub.s32 %s24, %s31
      %s108 = sor.u32 %s106, %s107
      %p109 = scmp.eq.s32.totalorder %s108, 0
      %s111 = sadd.s32 %s110, 1
      %s112 = scalar_select %p109, %s110, %s111
      %p115 = pneg %p109
      %p116 = scmp.eq.s32.totalorder %s16, 1
      %p117 = por %p115, %p116
      %p118 = scmp.ne.s32.totalorder %s110, %s113
      %p119 = scmp.eq.s32.totalorder %s16, 0
      %p120 = por %p118, %p119
      %p121 = scmp.ne.s32.totalorder %s110, %s113
      %p122 = scmp.eq.s32.totalorder %s21, 1
      %p123 = por %p121, %p122
      %p124 = scmp.ne.s32.totalorder %s113, %s114
      %p125 = scmp.eq.s32.totalorder %s21, 0
      %p126 = por %p124, %p125
      %p127 = scmp.ne.s32.totalorder %s113, %s114
      %p128 = scmp.eq.s32.totalorder %s22, 1
      %p129 = por %p127, %p128
      %p131 = scmp.ne.s32.totalorder %s114, %s130
      %p132 = scmp.eq.s32.totalorder %s22, 0
      %p133 = por %p131, %p132
      %s134 = ssub.s32 %s23, %s35
      %s135 = ssub.s32 %s24, %s31
      %s136 = sor.u32 %s134, %s135
      %p137 = scmp.eq.s32.totalorder %s136, 0
      %s139 = sadd.s32 %s138, 1
      %s140 = scalar_select %p137, %s138, %s139
      %p143 = pneg %p137
      %p144 = scmp.eq.s32.totalorder %s16, 1
      %p145 = por %p143, %p144
      %p146 = scmp.ne.s32.totalorder %s138, %s141
      %p147 = scmp.eq.s32.totalorder %s16, 0
      %p148 = por %p146, %p147
      %p149 = scmp.ne.s32.totalorder %s138, %s141
      %p150 = scmp.eq.s32.totalorder %s21, 1
      %p151 = por %p149, %p150
      %p152 = scmp.ne.s32.totalorder %s141, %s142
      %p153 = scmp.eq.s32.totalorder %s21, 0
      %p154 = por %p152, %p153
      %p155 = scmp.ne.s32.totalorder %s141, %s142
      %p156 = scmp.eq.s32.totalorder %s22, 1
      %p157 = por %p155, %p156
      %p159 = scmp.ne.s32.totalorder %s142, %s158
      %p160 = scmp.eq.s32.totalorder %s22, 0
      %p161 = por %p159, %p160
      %p162 = scmp.le.s32.totalorder 1, %s16
      %p163 = scmp.lt.s32.totalorder %s16, 3
      %p164 = pnand %p162, %p163
      %p165 = pneg %p164
      // Predicated region
      $region9: #{tpu_custom_call.1} parent=5 // pred_check
        _
      $region10: #{tpu_custom_call.1} parent=5 // pred_check_branch
        %167 = sbr.rel (%p164) target = $region12
      $region11: #{tpu_custom_call.1} parent=5 // pred_region
        %s168 = ssub.s32 %s16, 1
        // Predicated region
        $region13: #{tpu_custom_call.1} parent=11 // pred_check
          %p169 = pneg %p77
        $region14: #{tpu_custom_call.1} parent=11 // pred_check_branch
          %171 = sbr.rel (%p169) target = $region16
        $region15: #{tpu_custom_call.1} parent=11 // pred_region
          _
        $region16: #{tpu_custom_call.1} parent=11 // pred_fallthru
          _
        // Predicated region
        $region17: #{tpu_custom_call.1} parent=11 // pred_check
          %p172 = pneg %p98
        $region18: #{tpu_custom_call.1} parent=11 // pred_check_branch
          %174 = sbr.rel (%p172) target = $region20
        $region19: #{tpu_custom_call.1} parent=11 // pred_region
          _
        $region20: #{tpu_custom_call.1} parent=11 // pred_fallthru
          _
      $region12: #{tpu_custom_call.1} parent=5 // pred_fallthru
        _
      %p175 = scmp.lt.s32.totalorder %s16, 2
      // Predicated region
      $region21: #{tpu_custom_call.1} parent=5 // pred_check
        %p176 = pneg %p175
      $region22: #{tpu_custom_call.1} parent=5 // pred_check_branch
        %178 = sbr.rel (%p176) target = $region24
      $region23: #{tpu_custom_call.1} parent=5 // pred_region
        // Predicated region
        $region25: #{tpu_custom_call.1} parent=23 // pred_check
          %p179 = pneg %p50
        $region26: #{tpu_custom_call.1} parent=23 // pred_check_branch
          %181 = sbr.rel (%p179) target = $region28
        $region27: #{tpu_custom_call.1} parent=23 // pred_region
          %s182 = smul.u32 2, %s24
          %p183 = scmp.lt.s32.totalorder %s23, 1
          %s184 = scalar_select %p183, %s23, 1
          %p185 = scmp.lt.s32.totalorder %s182, 1
          %s186 = scalar_select %p185, %s182, 1
          %s187 = smul.addr %s184, 2
          %s188 = sadd.s32 %s186, %s187
          %s189 = smul.addr %s188, 8
          %s190 = scalar_lea.vmem %s0, %s189
          %s191 = smul.u32 2, %s24
        $region28: #{tpu_custom_call.1} parent=23 // pred_fallthru
          _
        // Predicated region
        $region29: #{tpu_custom_call.1} parent=23 // pred_check
          %p192 = pneg %p120
        $region30: #{tpu_custom_call.1} parent=23 // pred_check_branch
          %194 = sbr.rel (%p192) target = $region32
        $region31: #{tpu_custom_call.1} parent=23 // pred_region
          %s195 = sand.u32 %s110, 1
          %s196 = scalar_lea.sflag [#allocation3], %s195
          %s197 = sand.u32 %s110, 1
          %s198 = smul.addr %s197, 16
          %s199 = scalar_lea.vmem [#allocation2], %s198
          %s200 = smul.u32 2, %s24
          %s202 = ssub.s32 256, 256
          %203 = vsyncadd %s196, %s202
          %s204 = smul.addr %s23, 2
          %s205 = sadd.s32 %s200, %s204
          %s206 = smul.addr %s205, 128
          %s207 = scalar_lea.hbm %s3, %s206
          %s208 = sshll.u32 %s199, 4
          %s209 = int_to_ptr.vmem [resolvable:$true] %s208
          %214 = dma.hbm_to_vmem [thread:$0]  %s207, 256, %s209, %s196, 128, 128, 8
        $region32: #{tpu_custom_call.1} parent=23 // pred_fallthru
          _
      $region24: #{tpu_custom_call.1} parent=5 // pred_fallthru
        _
      %p215 = scmp.le.s32.totalorder 1, %s16
      %p216 = scmp.lt.s32.totalorder %s16, 3
      %p217 = pnand %p215, %p216
      %p218 = pneg %p217
      // Predicated region
      $region33: #{tpu_custom_call.1} parent=5 // pred_check
        _
      $region34: #{tpu_custom_call.1} parent=5 // pred_check_branch
        %220 = sbr.rel (%p217) target = $region36
      $region35: #{tpu_custom_call.1} parent=5 // pred_region
        %s221 = ssub.s32 %s16, 1
        %s222 = sand.u32 %s113, 1
        %s223 = scalar_lea.sflag [#allocation3], %s222
        %s224 = sand.u32 %s113, 1
        %s225 = smul.addr %s224, 16
        %s226 = scalar_lea.vmem [#allocation2], %s225
        // Predicated region
        $region37: #{tpu_custom_call.1} parent=35 // pred_check
          %p227 = pneg %p126
        $region38: #{tpu_custom_call.1} parent=35 // pred_check_branch
          %229 = sbr.rel (%p227) target = $region40
        $region39: #{tpu_custom_call.1} parent=35 // pred_region
          %230 = dma.done %s223, 256
        $region40: #{tpu_custom_call.1} parent=35 // pred_fallthru
          _
        %s231 = smul.u32 2, %s26
        %p232 = scmp.lt.s32.totalorder %s25, 1
        %s233 = scalar_select %p232, %s25, 1
        %p234 = scmp.lt.s32.totalorder %s231, 1
        %s235 = scalar_select %p234, %s231, 1
        %s236 = smul.addr %s233, 2
        %s237 = sadd.s32 %s235, %s236
        %s238 = smul.addr %s237, 8
        %s239 = scalar_lea.vmem %s0, %s238
        %p240 = pneg %p56
        %p241 = pneg %p53
        %p242 = pneg %p77
        %p243 = pneg %p74
        %p244 = pneg %p98
        %p245 = pneg %p95
        %s246 = sand.u32 %s113, 1
        %s247 = scalar_lea.sflag [#allocation3], %s246
        %s248 = sand.u32 %s113, 1
        %s249 = smul.addr %s248, 16
        %s250 = scalar_lea.vmem [#allocation2], %s249
        %p251 = pneg %p126
        %p252 = pneg %p123
        %p253 = pneg %p154
        %p254 = pneg %p151
        %s255 = sand.u32 %s141, 1
        %s256 = scalar_lea.sflag [#allocation4], %s255
        %s257 = sand.u32 %s141, 1
        %s258 = smul.addr %s257, 8
        %s259 = scalar_lea.vmem [#allocation5], %s258
        %s260 = smul.u32 2, %s26
        %p261 = scmp.lt.s32.totalorder %s25, 1
        %s262 = scalar_select %p261, %s25, 1
        %p263 = scmp.lt.s32.totalorder %s260, 1
        %s264 = scalar_select %p263, %s260, 1
        %s265 = smul.addr %s262, 2
        %s266 = sadd.s32 %s264, %s265
        %s267 = smul.addr %s266, 8
        %s268 = scalar_lea.vmem %s0, %s267
        %s269 = smul.u32 2, %s26
        %s270 = smul.u32 2, %s26
        %s271 = smul.u32 2, %s26
        %v273 = vld [vmem:[%s268] sm:$0xff]
        %v274 = vld [vmem:[%s268 + $0x8] sm:$0xff]
        %v275 = vpack.c.bf16 %v274, %v273
        %v276 = vld [vmem:[%s1] sm:$0xf]
        %v277 = vld [vmem:[%s1 + $0x4] sm:$0xf]
        %v278 = vld [vmem:[%s1 + $0x8] sm:$0xf]
        %v279 = vld [vmem:[%s1 + $0xc] sm:$0xf]
        %v280 = vld [vmem:[%s1 + $0x10] sm:$0xf]
        %v281 = vld [vmem:[%s1 + $0x14] sm:$0xf]
        %v282 = vld [vmem:[%s2] sm:$0x1]
        %v284 = vlaneseq
        %v285 = vshrl.u32 %v284, 7
        %v286 = vsub.s32 0, %v285
        %v287 = vrot.slane %v282, %v286
        %v295 = vunpack.c.l.b16 %v276
        %v296 = vunpack.c.l.b16 %v277
        %v297 = vunpack.c.l.b16 %v278
        %v298 = vunpack.c.l.b16 %v279
        %v299 = vunpack.c.l.b16 %v280
        %v300 = vunpack.c.l.b16 %v281
        %v301 = vpack.c.b16 %v296, %v295
        %v302 = vpack.c.b16 %v298, %v297
        %v303 = vpack.c.b16 %v300, %v299
        %vm307 = vcmask 392192
        %v309 = vsel %vm307, %v275, 0
        %311 = vmatprep.subr.bf16.mxu0 0
        %312 = vmatpush1.bf16.msra.mxu0 0
        %313 = vmatprep.subr.bf16.mxu0 0
        %314 = vmatpush1.bf16.msra.mxu0 0
        %315 = vmatprep.subr.bf16.mxu0 0
        %316 = vmatpush1.bf16.msra.mxu0 0
        %317 = vmatprep.subr.bf16.mxu0 0
        %318 = vmatpush1.bf16.msra.mxu0 0
        %319 = vmatprep.subr.bf16.mxu0 0
        %320 = vmatpush1.bf16.msra.mxu0 0
        %321 = vmatprep.subr.bf16.mxu0 0
        %322 = vmatpush1.bf16.msra.mxu0 %v303
        %323 = vmatprep.subr.bf16.mxu0 0
        %324 = vmatpush1.bf16.msra.mxu0 %v302
        %325 = vmatprep.subr.bf16.mxu0 0
        %326 = vmatpush1.bf16.msra.mxu0 %v301
        %327 = vmatprep.subr.bf16.mxu0 0
        %328 = vmatpush2.bf16.msra.mxu0 0
        %329 = vmatprep.subr.bf16.mxu0 0
        %330 = vmatpush2.bf16.msra.mxu0 0
        %331 = vmatprep.subr.bf16.mxu0 0
        %332 = vmatpush2.bf16.msra.mxu0 0
        %333 = vmatprep.subr.bf16.mxu0 0
        %334 = vmatpush2.bf16.msra.mxu0 0
        %335 = vmatprep.subr.bf16.mxu0 0
        %336 = vmatpush2.bf16.msra.mxu0 0
        %337 = vmatprep.subr.bf16.mxu0 0
        %338 = vmatpush2.bf16.msra.mxu0 0
        %339 = vmatprep.subr.bf16.mxu0 0
        %340 = vmatpush2.bf16.msra.mxu0 0
        %341 = vmatprep.subr.bf16.mxu0 0
        %342 = vmatpush2.bf16.msra.mxu0 0
        %343 = vmatprep.mubr.bf16.mxu0 0
        %344 = vmatmul.mubr.bf16.gmra.mxu0 %v309
        %v345 = vpop.f32.mrf.mxu0
        %v346 = vadd.f32 %v287, %v345
        %v347 = vpop.f32.mrf.mxu0
        %v348 = vpop.f32.mrf.mxu0
        %v349 = vadd.f32 %v287, %v348
        %v350 = vpop.f32.mrf.mxu0
        %351 = vdwg.mxu0
        %v352 = vld [vmem:[%s226] sm:$0xff]
        %v353 = vld [vmem:[%s226 + $0x8] sm:$0xff]
        %v354 = vadd.f32 %v346, %v352
        %v355 = vadd.f32 %v349, %v353
        %v356 = vpack.c.bf16 %v355, %v354
        %v358 = vunpack.c.l.b16 %v356
        %v359 = vunpack.c.h.b16 %v356
        %v360 = vpack.c.b16 %v358, %v358
        %v361 = vpack.c.b16 %v359, %v359
        %vm364 = vcmask 257024
        %365 = vst.msk [vmem:[%s259] sm:$0xf] %vm364, %v360
        %366 = vst.msk [vmem:[%s259 + $0x4] sm:$0xf] %vm364, %v361
        %s367 = sand.u32 %s141, 1
        %s368 = scalar_lea.sflag [#allocation4], %s367
        %s369 = sand.u32 %s141, 1
        %s370 = smul.addr %s369, 8
        %s371 = scalar_lea.vmem [#allocation5], %s370
        // Predicated region
        $region41: #{tpu_custom_call.1} parent=35 // pred_check
          %p372 = pneg %p151
        $region42: #{tpu_custom_call.1} parent=35 // pred_check_branch
          %374 = sbr.rel (%p372) target = $region44
        $region43: #{tpu_custom_call.1} parent=35 // pred_region
          %s375 = smul.u32 2, %s26
          %s377 = ssub.s32 128, 128
          %378 = vsyncadd %s368, %s377
          %s379 = smul.addr %s25, 2
          %s380 = sadd.s32 %s375, %s379
          %s381 = smul.addr %s380, 64
          %s382 = scalar_lea.hbm %s4, %s381
          %s383 = sshll.u32 %s371, 4
          %s384 = int_to_ptr.vmem [resolvable:$true] %s383
          %389 = dma.vmem_to_hbm [thread:$0]  %s384, 128, %s382, %s368, 64, 64, 4
        $region44: #{tpu_custom_call.1} parent=35 // pred_fallthru
          _
      $region36: #{tpu_custom_call.1} parent=5 // pred_fallthru
        _
      %p390 = scmp.le.s32.totalorder 2, %s16
      // Predicated region
      $region45: #{tpu_custom_call.1} parent=5 // pred_check
        %p391 = pneg %p390
      $region46: #{tpu_custom_call.1} parent=5 // pred_check_branch
        %393 = sbr.rel (%p391) target = $region48
      $region47: #{tpu_custom_call.1} parent=5 // pred_region
        %s394 = ssub.s32 %s16, 2
        // Predicated region
        $region49: #{tpu_custom_call.1} parent=47 // pred_check
          %p395 = pneg %p157
        $region50: #{tpu_custom_call.1} parent=47 // pred_check_branch
          %397 = sbr.rel (%p395) target = $region52
        $region51: #{tpu_custom_call.1} parent=47 // pred_region
          %s398 = sand.u32 %s142, 1
          %s399 = scalar_lea.sflag [#allocation4], %s398
          %s400 = sand.u32 %s142, 1
          %s401 = smul.addr %s400, 8
          %s402 = scalar_lea.vmem [#allocation5], %s401
          %403 = dma.done %s399, 128
        $region52: #{tpu_custom_call.1} parent=47 // pred_fallthru
          _
      $region48: #{tpu_custom_call.1} parent=5 // pred_fallthru
        _
    $region6: #{tpu_custom_call.1} parent=1 // loop_footer
      %s20 = sadd.s32 1, %s16
    $region7: #{tpu_custom_call.1} parent=1 // loop_footer_branch
      %15 = sbr.rel target = $region3
    $region8: #{tpu_custom_call.1} parent=1 // loop_exit
      _
    %404 = vsyncpa [#allocation3], 1
    %s405 = scalar_lea.sflag [#allocation3], 1
    %406 = vsyncpa %s405, 1
    %407 = vsyncpa [#allocation4], 1
    %s408 = scalar_lea.sflag [#allocation4], 1
    %409 = vsyncpa %s408, 1

</llo_original>
